<compile_context>
chip_gen: v7x
topology: tpu7x:2x2x1
jax: 0.10.0
libtpu: 0.0.40
codegen_flags: <defaults>
</compile_context>

<pallas_src>
import functools

import jax
import jax.numpy as jnp
from jax.experimental import pallas as pl
from jax.experimental.pallas import tpu as pltpu


# ---------------------------------------------------------------------------
# Kernel: one batch tile (TB, C, L) per grid step
# ---------------------------------------------------------------------------
def spatial_attention_kernel(p_ref, x_ref, o_ref):
    """p_ref: SMEM (8,) f32 = [w_avg[l-1], w_avg[l], w_avg[l+1],
                               w_max[l-1], w_max[l], w_max[l+1], bias, pad]
       x_ref / o_ref: VMEM (TB, C, L) in the input's native dtype."""
    x = x_ref[...]                                        # (TB, C, L), native dtype
    TB, C, L = x.shape

    # ---- Channel pooling (f32 accumulation, small (TB, L) results) ----
    if C >= 16 and C % 8 == 0:
        # Split reduce: per-group VPU adds/maxes first, then one 8-sublane
        # XLU reduce (v7x has only 2 XLU units vs 3.2 TB/s HBM).
        xg = x.reshape(TB, C // 8, 8, L)
        avg = jnp.sum(jnp.sum(xg, axis=1, dtype=jnp.float32), axis=1) * (1.0 / C)
        mx = jnp.max(jnp.max(xg, axis=1), axis=1).astype(jnp.float32)
    else:
        avg = jnp.mean(x, axis=1, dtype=jnp.float32)      # (TB, L)
        mx = jnp.max(x, axis=1).astype(jnp.float32)       # (TB, L)

    # ---- Conv1d(2 -> 1, k=3, padding=1) via rolls + shared edge masks ----
    # NOTE: assumes the block spans the full sequence length (block L == L),
    # which the wrapper guarantees -- no L tiling.
    lane = jax.lax.broadcasted_iota(jnp.int32, (TB, L), 1)
    not_first = lane != 0               # zero the wrapped "prev" tap at l == 0
    not_last = lane != (L - 1)          # zero the wrapped "next" tap at l == L-1

    def tap_prev(v):                    # v[l-1], zero-padded at the left edge
        return jnp.where(not_first, pltpu.roll(v, shift=1, axis=1), 0.0)

    def tap_next(v):                    # v[l+1], zero-padded at the right edge
        return jnp.where(not_last, pltpu.roll(v, shift=L - 1, axis=1), 0.0)

    # 6 scalar-broadcast FMAs on the VPU (the MXU would be >99% idle on 2x3).
    s = (p_ref[1] * avg + p_ref[4] * mx
         + p_ref[0] * tap_prev(avg) + p_ref[3] * tap_prev(mx)
         + p_ref[2] * tap_next(avg) + p_ref[5] * tap_next(mx)
         + p_ref[6])
    att = jax.nn.sigmoid(s)                               # (TB, L) f32, EUP

    # ---- Apply attention in the native dtype (no whole-tile f32 upconvert) --
    o_ref[...] = (x * att.astype(x.dtype)[:, None, :]).astype(o_ref.dtype)


# ---------------------------------------------------------------------------
# Wrapper
# ---------------------------------------------------------------------------
def _vmem_capacity_bytes():
    try:
        return int(pltpu.get_tpu_info().vmem_capacity_bytes)
    except Exception:
        return 128 << 20                                  # v5e/v6e physical


@functools.partial(jax.jit, static_argnames=("tb",))
def spatial_attention_forward(x, w, b, *, tb=1024):
    """x: (N, C, L); w: (1, 2, 3) Conv1d weight; b: (1,) Conv1d bias."""
    N, C, L = x.shape
    # NOTE: L is kept as the full lane dim of every block (required by the
    # roll/edge-mask conv).  If the real model used an L that is not a
    # multiple of 128, fold/pad it once on the caller side to keep output
    # stores lane-dense; with L == 128 the layout is already optimal.

    # Pack the 7 conv scalars into one SMEM vector (one copy, no per-parameter
    # (8,128)-padded VMEM buffers).
    packed = jnp.concatenate([
        w.reshape(-1).astype(jnp.float32),                # 6 taps
        b.reshape(-1).astype(jnp.float32),                # bias
        jnp.zeros((1,), jnp.float32),                     # pad to 8
    ])

    # ---- dtype- and generation-aware batch-tile / VMEM budget ----
    itemsize = jnp.dtype(x.dtype).itemsize
    vmem_cap = _vmem_capacity_bytes()
    # Explicit scoped-VMEM limit: ~64 MiB on v5e/v6e (128 MiB physical),
    # ~45 MiB on v7x (64 MiB physical), leaving headroom for Mosaic scratch.
    vmem_limit = min(int(vmem_cap * 0.7), 64 << 20)
    tile_budget = int(vmem_limit * 0.8)
    # Per batch-row VMEM cost of one grid step: 2x double-buffered input +
    # 2x double-buffered output blocks, plus a conservative f32 working copy
    # (worst case) and the small per-row f32 pooling/attention maps.
    bytes_per_row = 4 * C * L * itemsize + C * L * 4 + 8 * L * 4
    tb = max(1, min(tb, max(1, tile_budget // bytes_per_row), N))
    if N >= 2:
        tb = min(tb, (N + 1) // 2)      # >= 2 grid steps so v7x's 2 TCs both work

    n_blocks = pl.cdiv(N, tb)           # ragged last block: Pallas masks it

    grid_spec = pltpu.PrefetchScalarGridSpec(
        num_scalar_prefetch=0,
        grid=(n_blocks,),
        in_specs=[
            pl.BlockSpec(memory_space=pltpu.MemorySpace.SMEM),   # conv params
            pl.BlockSpec((tb, C, L), lambda n: (n, 0, 0)),       # x tile
        ],
        out_specs=pl.BlockSpec((tb, C, L), lambda n: (n, 0, 0)),
    )

    return pl.pallas_call(
        spatial_attention_kernel,
        out_shape=jax.ShapeDtypeStruct((N, C, L), x.dtype),
        grid_spec=grid_spec,
        compiler_params=pltpu.CompilerParams(
            dimension_semantics=("parallel",),   # shard batch tiles (v7x 2 TCs)
            vmem_limit_bytes=vmem_limit),
    )(packed, x)


# ---------------------------------------------------------------------------
# Pure-JAX reference (exact PyTorch Conv1d semantics) for correctness check
# ---------------------------------------------------------------------------
def reference_forward(x, w, b):
    N, C, L = x.shape
    avg = jnp.mean(x, axis=1, keepdims=True)              # (N, 1, L)
    mx = jnp.max(x, axis=1, keepdims=True)                # (N, 1, L)
    comb = jnp.concatenate([avg, mx], axis=1)             # (N, 2, L)
    combp = jnp.pad(comb, ((0, 0), (0, 0), (1, 1)))       # zero pad, padding=1
    att = b[0] + sum(
        jnp.einsum('c,ncl->nl', w[0, :, k], combp[:, :, k:k + L])
        for k in range(3))
    att = jax.nn.sigmoid(att)[:, None, :]
    return x * att


if __name__ == "__main__":
    # Small shapes consistent with the module: x is (batch, channels, length)
    # for Conv1d.  N = 7 deliberately does not divide the batch tile so the
    # ragged-last-block path (no pad / no output slice) is exercised.
    N, C, L = 7, 8, 128

    key = jax.random.PRNGKey(0)
    kx, kw, kb = jax.random.split(key, 3)
    x = jax.random.normal(kx, (N, C, L), jnp.float32)
    w = 0.3 * jax.random.normal(kw, (1, 2, 3), jnp.float32)   # Conv1d(2,1,3)
    b = 0.1 * jax.random.normal(kb, (1,), jnp.float32)

    y = spatial_attention_forward(x, w, b)
    y = jax.block_until_ready(y)

    y_ref = reference_forward(x, w, b)
    assert y.shape == (N, C, L), y.shape
    assert jnp.allclose(y, y_ref, atol=1e-5, rtol=1e-5), (
        float(jnp.max(jnp.abs(y - y_ref))))

    print("KERNEL_OK")
</pallas_src>

<mosaic_0001>
module attributes {stable_mosaic.version = 11 : i64} {
  func.func @spatial_attention_kernel(%arg0: i32, %arg1: memref<8xf32, #tpu.memory_space<smem>>, %arg2: memref<4x8x128xf32, #tpu.memory_space<vmem>>, %arg3: memref<4x8x128xf32, #tpu.memory_space<vmem>>) attributes {dimension_semantics = [#tpu.dimension_semantics<parallel>], iteration_bounds = array<i64: 2>, scalar_prefetch = 0 : i64, scratch_operands = 0 : i64, tpu.core_type = #tpu.core_type<tc>, window_params = [{transform_indices = @transform_0, window_bounds = array<i64: 8>}, {transform_indices = @transform_1, window_bounds = array<i64: 4, 8, 128>}, {transform_indices = @transform_2, window_bounds = array<i64: 4, 8, 128>}]} {
    %c0 = arith.constant 0 : index
    %c0_0 = arith.constant 0 : index
    %c0_1 = arith.constant 0 : index
    %0 = vector.load %arg2[%c0, %c0_0, %c0_1] : memref<4x8x128xf32, #tpu.memory_space<vmem>>, vector<4x8x128xf32>
    %cst = arith.constant dense<0.000000e+00> : vector<4x128xf32>
    %1 = vector.multi_reduction <add>, %0, %cst [1] : vector<4x8x128xf32> to vector<4x128xf32>
    %cst_2 = arith.constant 8.000000e+00 : f32
    %2 = vector.broadcast %cst_2 : f32 to vector<4x128xf32>
    %3 = arith.divf %1, %2 : vector<4x128xf32>
    %cst_3 = arith.constant dense<0xFF800000> : vector<4x128xf32>
    %4 = vector.multi_reduction <maximumf>, %0, %cst_3 [1] : vector<4x8x128xf32> to vector<4x128xf32>
    %5 = tpu.iota {dimensions = array<i32: 1>} : vector<4x128xi32>
    %c0_i32 = arith.constant 0 : i32
    %6 = vector.broadcast %c0_i32 : i32 to vector<4x128xi32>
    %7 = arith.cmpi ne, %5, %6 : vector<4x128xi32>
    %c127_i32 = arith.constant 127 : i32
    %8 = vector.broadcast %c127_i32 : i32 to vector<4x128xi32>
    %9 = arith.cmpi ne, %5, %8 : vector<4x128xi32>
    %c1 = arith.constant 1 : index
    %10 = memref.load %arg1[%c1] : memref<8xf32, #tpu.memory_space<smem>>
    %11 = vector.broadcast %10 : f32 to vector<4x128xf32>
    %12 = arith.mulf %11, %3 : vector<4x128xf32>
    %c4 = arith.constant 4 : index
    %13 = memref.load %arg1[%c4] : memref<8xf32, #tpu.memory_space<smem>>
    %14 = vector.broadcast %13 : f32 to vector<4x128xf32>
    %15 = arith.mulf %14, %4 : vector<4x128xf32>
    %16 = arith.addf %12, %15 : vector<4x128xf32>
    %c0_4 = arith.constant 0 : index
    %17 = memref.load %arg1[%c0_4] : memref<8xf32, #tpu.memory_space<smem>>
    %c1_i32 = arith.constant 1 : i32
    %18 = tpu.dynamic_rotate %3 by %c1_i32 dim 1 : vector<4x128xf32>, i32 -> vector<4x128xf32>
    %cst_5 = arith.constant 0.000000e+00 : f32
    %19 = vector.broadcast %cst_5 : f32 to vector<4x128xf32>
    %20 = arith.select %7, %18, %19 : vector<4x128xi1>, vector<4x128xf32>
    %21 = vector.broadcast %17 : f32 to vector<4x128xf32>
    %22 = arith.mulf %21, %20 : vector<4x128xf32>
    %23 = arith.addf %16, %22 : vector<4x128xf32>
    %c3 = arith.constant 3 : index
    %24 = memref.load %arg1[%c3] : memref<8xf32, #tpu.memory_space<smem>>
    %c1_i32_6 = arith.constant 1 : i32
    %25 = tpu.dynamic_rotate %4 by %c1_i32_6 dim 1 : vector<4x128xf32>, i32 -> vector<4x128xf32>
    %cst_7 = arith.constant 0.000000e+00 : f32
    %26 = vector.broadcast %cst_7 : f32 to vector<4x128xf32>
    %27 = arith.select %7, %25, %26 : vector<4x128xi1>, vector<4x128xf32>
    %28 = vector.broadcast %24 : f32 to vector<4x128xf32>
    %29 = arith.mulf %28, %27 : vector<4x128xf32>
    %30 = arith.addf %23, %29 : vector<4x128xf32>
    %c2 = arith.constant 2 : index
    %31 = memref.load %arg1[%c2] : memref<8xf32, #tpu.memory_space<smem>>
    %c127_i32_8 = arith.constant 127 : i32
    %32 = tpu.dynamic_rotate %3 by %c127_i32_8 dim 1 : vector<4x128xf32>, i32 -> vector<4x128xf32>
    %cst_9 = arith.constant 0.000000e+00 : f32
    %33 = vector.broadcast %cst_9 : f32 to vector<4x128xf32>
    %34 = arith.select %9, %32, %33 : vector<4x128xi1>, vector<4x128xf32>
    %35 = vector.broadcast %31 : f32 to vector<4x128xf32>
    %36 = arith.mulf %35, %34 : vector<4x128xf32>
    %37 = arith.addf %30, %36 : vector<4x128xf32>
    %c5 = arith.constant 5 : index
    %38 = memref.load %arg1[%c5] : memref<8xf32, #tpu.memory_space<smem>>
    %c127_i32_10 = arith.constant 127 : i32
    %39 = tpu.dynamic_rotate %4 by %c127_i32_10 dim 1 : vector<4x128xf32>, i32 -> vector<4x128xf32>
    %cst_11 = arith.constant 0.000000e+00 : f32
    %40 = vector.broadcast %cst_11 : f32 to vector<4x128xf32>
    %41 = arith.select %9, %39, %40 : vector<4x128xi1>, vector<4x128xf32>
    %42 = vector.broadcast %38 : f32 to vector<4x128xf32>
    %43 = arith.mulf %42, %41 : vector<4x128xf32>
    %44 = arith.addf %37, %43 : vector<4x128xf32>
    %c6 = arith.constant 6 : index
    %45 = memref.load %arg1[%c6] : memref<8xf32, #tpu.memory_space<smem>>
    %46 = vector.broadcast %45 : f32 to vector<4x128xf32>
    %47 = arith.addf %44, %46 : vector<4x128xf32>
    %48 = arith.negf %47 : vector<4x128xf32>
    %49 = math.exp %48 : vector<4x128xf32>
    %cst_12 = arith.constant 1.000000e+00 : f32
    %50 = vector.broadcast %cst_12 : f32 to vector<4x128xf32>
    %51 = arith.addf %50, %49 : vector<4x128xf32>
    %52 = arith.divf %50, %51 : vector<4x128xf32>
    %53 = vector.shape_cast %52 : vector<4x128xf32> to vector<4x1x128xf32>
    %54 = vector.broadcast %53 : vector<4x1x128xf32> to vector<4x8x128xf32>
    %55 = arith.mulf %0, %54 : vector<4x8x128xf32>
    %c0_13 = arith.constant 0 : index
    %c0_14 = arith.constant 0 : index
    %c0_15 = arith.constant 0 : index
    %56 = vector.load %arg3[%c0_13, %c0_14, %c0_15] : memref<4x8x128xf32, #tpu.memory_space<vmem>>, vector<4x8x128xf32>
    tpu.vector_store %arg3[%c0_13, %c0_14, %c0_15], %55 {strides = array<i32>} : memref<4x8x128xf32, #tpu.memory_space<vmem>>, vector<4x8x128xf32>,
    return
  }
  func.func @transform_0(%arg0: i32) -> i32 {
    %c0_i32 = arith.constant 0 : i32
    %c0_i32_0 = arith.constant 0 : i32
    return %c0_i32 : i32
  }
  func.func @transform_1(%arg0: i32) -> (i32, i32, i32) {
    %c0_i32 = arith.constant 0 : i32
    %c0_i32_0 = arith.constant 0 : i32
    %c0_i32_1 = arith.constant 0 : i32
    return %arg0, %c0_i32, %c0_i32_0 : i32, i32, i32
  }
  func.func @transform_2(%arg0: i32) -> (i32, i32, i32) {
    %c0_i32 = arith.constant 0 : i32
    %c0_i32_0 = arith.constant 0 : i32
    %c0_i32_1 = arith.constant 0 : i32
    return %arg0, %c0_i32, %c0_i32_0 : i32, i32, i32
  }
}

</mosaic_0001>

<llo_original>
// kernel: spatial_attention_forward.1
$region0: #{spatial_attention_forward.1}
  #allocation0 [shape = 'u32[]', space=smem, size = 0x4, offset = 0x4, fixed_abs, tag = 'smem constant byte address 0x4 - core index']
  #allocation1 [shape = 'u32[144,128]{1,0:T(1,128)}', space=vmem, size = 0x12000, scoped, tag = 'internal scratch']
  %s0 = inlined_call_operand.hbm [shape: f32[8], index: 0, kind: input, shape index: {}]
  %s1 = inlined_call_operand.hbm [shape: f32[7,8,128], index: 1, kind: input, shape index: {}]
  %s2 = inlined_call_operand.hbm [shape: f32[7,8,128], index: 2, kind: output, shape index: {}]
  %s3 = sld [smem:[#allocation0]]
  $region49: #{spatial_attention_forward.1} parent=0
    _
  %s5 = ssub.s32 1, %s3
  %s6 = scalar_select 0, %s5, %s3
  $region1: #{spatial_attention_forward.1} parent=0
    #allocation2 [shape = 'u8[512]{0}', space=smem, size = 0x200, scoped, tag = 'input window, operand 0, single buffered']
    #allocation3 [shape = 's32[2]{0}', space=sflag, size = 0x8, scoped, tag = 'scoped memory for spatial_attention_forward.1']
    #allocation4 [shape = 's32[2]{0}', space=sflag, size = 0x8, scoped, tag = 'scoped memory for spatial_attention_forward.1']
    #allocation5 [shape = 's32[2]{0}', space=sflag, size = 0x8, scoped, tag = 'scoped memory for spatial_attention_forward.1']
    #allocation6 [shape = 'u8[32768]{0}', space=vmem, size = 0x8000, scoped, tag = 'input window, operand 1']
    #allocation7 [shape = 'u8[32768]{0}', space=vmem, size = 0x8000, scoped, tag = 'output window, operand 0']
    %7 = vsyncpa [#allocation5], 0
    %8 = vsyncpa [#allocation3], 0
    %s9 = scalar_lea.sflag [#allocation3], 1
    %10 = vsyncpa %s9, 0
    %11 = vsyncpa [#allocation4], 0
    %s12 = scalar_lea.sflag [#allocation4], 1
    %13 = vsyncpa %s12, 0
    loop: start=0, step=1, limit=4
    $region2: #{spatial_attention_forward.1} parent=1 // loop_pre_header
      _
    $region3: #{spatial_attention_forward.1} parent=1 // loop_header
      %s15 = sphi 0, %s19
      %p16 = scmp.ge.s32.totalorder %s15, 4
      %s23 = sphi 0, %s23
      %s25 = sphi 0, %s23
      %s26 = sphi 0, %s25
      %s40 = sphi 0, %s26
      %s46 = sphi 0, %s48
      %s49 = sphi 0, %s46
      %s50 = sphi 0, %s49
      %s66 = sphi 0, %s50
      %s72 = sphi 0, %s74
      %s75 = sphi 0, %s72
      %s76 = sphi 0, %s75
      %s92 = sphi 0, %s76
    $region4: #{spatial_attention_forward.1} parent=1 // loop_header_branch
      %18 = sbr.rel (%p16) target = $region8
    $region5: #{spatial_attention_forward.1} parent=1 // loop_body
      %s20 = ssub.s32 %s15, 1
      %s21 = ssub.s32 %s15, 2
      %s22 = sadd.s32 %s15, 1
      %s24 = sadd.s32 %s23, 1
      %p27 = scmp.eq.s32.totalorder %s15, 1
      %p28 = scmp.ne.s32.totalorder %s23, %s25
      %p29 = scmp.eq.s32.totalorder %s15, 0
      %p30 = por %p28, %p29
      %p31 = scmp.ne.s32.totalorder %s23, %s25
      %p32 = scmp.eq.s32.totalorder %s20, 1
      %p33 = por %p31, %p32
      %p34 = scmp.ne.s32.totalorder %s25, %s26
      %p35 = scmp.eq.s32.totalorder %s20, 0
      %p36 = por %p34, %p35
      %p37 = scmp.ne.s32.totalorder %s25, %s26
      %p38 = scmp.eq.s32.totalorder %s21, 1
      %p39 = por %p37, %p38
      %p41 = scmp.ne.s32.totalorder %s26, %s40
      %p42 = scmp.eq.s32.totalorder %s21, 0
      %p43 = por %p41, %p42
      %s44 = ssub.s32 %s15, %s22
      %p45 = scmp.eq.s32.totalorder %s44, 0
      %s47 = sadd.s32 %s46, 1
      %s48 = scalar_select %p45, %s46, %s47
      %p51 = pneg %p45
      %p52 = scmp.eq.s32.totalorder %s15, 1
      %p53 = por %p51, %p52
      %p54 = scmp.ne.s32.totalorder %s46, %s49
      %p55 = scmp.eq.s32.totalorder %s15, 0
      %p56 = por %p54, %p55
      %p57 = scmp.ne.s32.totalorder %s46, %s49
      %p58 = scmp.eq.s32.totalorder %s20, 1
      %p59 = por %p57, %p58
      %p60 = scmp.ne.s32.totalorder %s49, %s50
      %p61 = scmp.eq.s32.totalorder %s20, 0
      %p62 = por %p60, %p61
      %p63 = scmp.ne.s32.totalorder %s49, %s50
      %p64 = scmp.eq.s32.totalorder %s21, 1
      %p65 = por %p63, %p64
      %p67 = scmp.ne.s32.totalorder %s50, %s66
      %p68 = scmp.eq.s32.totalorder %s21, 0
      %p69 = por %p67, %p68
      %s70 = ssub.s32 %s15, %s22
      %p71 = scmp.eq.s32.totalorder %s70, 0
      %s73 = sadd.s32 %s72, 1
      %s74 = scalar_select %p71, %s72, %s73
      %p77 = pneg %p71
      %p78 = scmp.eq.s32.totalorder %s15, 1
      %p79 = por %p77, %p78
      %p80 = scmp.ne.s32.totalorder %s72, %s75
      %p81 = scmp.eq.s32.totalorder %s15, 0
      %p82 = por %p80, %p81
      %p83 = scmp.ne.s32.totalorder %s72, %s75
      %p84 = scmp.eq.s32.totalorder %s20, 1
      %p85 = por %p83, %p84
      %p86 = scmp.ne.s32.totalorder %s75, %s76
      %p87 = scmp.eq.s32.totalorder %s20, 0
      %p88 = por %p86, %p87
      %p89 = scmp.ne.s32.totalorder %s75, %s76
      %p90 = scmp.eq.s32.totalorder %s21, 1
      %p91 = por %p89, %p90
      %p93 = scmp.ne.s32.totalorder %s76, %s92
      %p94 = scmp.eq.s32.totalorder %s21, 0
      %p95 = por %p93, %p94
      %p96 = scmp.le.s32.totalorder 1, %s15
      %p97 = scmp.lt.s32.totalorder %s15, 3
      %p98 = pnand %p96, %p97
      %p99 = pneg %p98
      // Predicated region
      $region9: #{spatial_attention_forward.1} parent=5 // pred_check
        _
      $region10: #{spatial_attention_forward.1} parent=5 // pred_check_branch
        %101 = sbr.rel (%p98) target = $region12
      $region11: #{spatial_attention_forward.1} parent=5 // pred_region
        %s102 = ssub.s32 %s15, 1
        // Predicated region
        $region13: #{spatial_attention_forward.1} parent=11 // pred_check
          %p103 = pneg %p36
        $region14: #{spatial_attention_forward.1} parent=11 // pred_check_branch
          %105 = sbr.rel (%p103) target = $region16
        $region15: #{spatial_attention_forward.1} parent=11 // pred_region
          %s107 = ssub.s32 16, 16
          %108 = vsyncadd [#allocation5], %s107
          %111 = dma.hbm_to_smem %s0, 16, [#allocation2], [#allocation5]
        $region16: #{spatial_attention_forward.1} parent=11 // pred_fallthru
          _
      $region12: #{spatial_attention_forward.1} parent=5 // pred_fallthru
        _
      %p112 = scmp.lt.s32.totalorder %s15, 2
      // Predicated region
      $region17: #{spatial_attention_forward.1} parent=5 // pred_check
        %p113 = pneg %p112
      $region18: #{spatial_attention_forward.1} parent=5 // pred_check_branch
        %115 = sbr.rel (%p113) target = $region20
      $region19: #{spatial_attention_forward.1} parent=5 // pred_region
        // Predicated region
        $region21: #{spatial_attention_forward.1} parent=19 // pred_check
          %p116 = pneg %p56
        $region22: #{spatial_attention_forward.1} parent=19 // pred_check_branch
          %118 = sbr.rel (%p116) target = $region24
        $region23: #{spatial_attention_forward.1} parent=19 // pred_region
          %s119 = sand.u32 %s46, 1
          %s120 = scalar_lea.sflag [#allocation3], %s119
          %s121 = sand.u32 %s46, 1
          %s122 = smul.addr %s121, 32
          %s123 = scalar_lea.vmem [#allocation6], %s122
          %s124 = smul.u32 4, %s15
          %s125 = ssub.s32 7, %s124
          %p126 = scmp.lt.s32.totalorder %s125, 4
          %s127 = scalar_select %p126, %s125, 4
          %s128 = smul.u32 128, %s127
          %s130 = ssub.s32 512, %s128
          %131 = vsyncadd %s120, %s130
          %p132 = scmp.ne.s32.totalorder 0, %s128
          %s133 = smul.addr %s124, 128
          %s134 = scalar_lea.hbm %s1, %s133
          %s135 = smul.u32 8, %s127
          %s136 = sshll.u32 %s123, 4
          %s137 = int_to_ptr.vmem [resolvable:$true] %s136
          %s138 = sshll.u32 %s135, 4
          %142 = dma.hbm_to_vmem [thread:$0]  (%p132), %s134, %s138, %s137, %s120, 128, 128, 8
        $region24: #{spatial_attention_forward.1} parent=19 // pred_fallthru
          _
      $region20: #{spatial_attention_forward.1} parent=5 // pred_fallthru
        _
      %p143 = scmp.le.s32.totalorder 1, %s15
      %p144 = scmp.lt.s32.totalorder %s15, 3
      %p145 = pnand %p143, %p144
      %p146 = pneg %p145
      // Predicated region
      $region25: #{spatial_attention_forward.1} parent=5 // pred_check
        _
      $region26: #{spatial_attention_forward.1} parent=5 // pred_check_branch
        %148 = sbr.rel (%p145) target = $region28
      $region27: #{spatial_attention_forward.1} parent=5 // pred_region
        %s149 = ssub.s32 %s15, 1
        // Predicated region
        $region29: #{spatial_attention_forward.1} parent=27 // pred_check
          %p150 = pneg %p36
        $region30: #{spatial_attention_forward.1} parent=27 // pred_check_branch
          %152 = sbr.rel (%p150) target = $region32
        $region31: #{spatial_attention_forward.1} parent=27 // pred_region
          %153 = dma.done [#allocation5], 16
        $region32: #{spatial_attention_forward.1} parent=27 // pred_fallthru
          _
        %s154 = sand.u32 %s49, 1
        %s155 = scalar_lea.sflag [#allocation3], %s154
        %s156 = sand.u32 %s49, 1
        %s157 = smul.addr %s156, 32
        %s158 = scalar_lea.vmem [#allocation6], %s157
        // Predicated region
        $region33: #{spatial_attention_forward.1} parent=27 // pred_check
          %p159 = pneg %p62
        $region34: #{spatial_attention_forward.1} parent=27 // pred_check_branch
          %161 = sbr.rel (%p159) target = $region36
        $region35: #{spatial_attention_forward.1} parent=27 // pred_region
          %162 = dma.done %s155, 512
        $region36: #{spatial_attention_forward.1} parent=27 // pred_fallthru
          _
        %163 = sfence
        %p164 = pneg %p36
        %p165 = pneg %p33
        %s166 = sand.u32 %s49, 1
        %s167 = scalar_lea.sflag [#allocation3], %s166
        %s168 = sand.u32 %s49, 1
        %s169 = smul.addr %s168, 32
        %s170 = scalar_lea.vmem [#allocation6], %s169
        %p171 = pneg %p62
        %p172 = pneg %p59
        %p173 = pneg %p88
        %p174 = pneg %p85
        %s175 = sand.u32 %s75, 1
        %s176 = scalar_lea.sflag [#allocation4], %s175
        %s177 = sand.u32 %s75, 1
        %s178 = smul.addr %s177, 32
        %s179 = scalar_lea.vmem [#allocation7], %s178
        %s180 = smul.u32 4, %s20
        %s181 = ssub.s32 7, %s180
        %p182 = scmp.lt.s32.totalorder %s181, 4
        %s183 = scalar_select %p182, %s181, 4
        %s184 = smul.u32 128, %s183
        %s185 = smul.u32 4, %s20
        %s186 = ssub.s32 7, %s185
        %p187 = scmp.lt.s32.totalorder %s186, 4
        %s188 = scalar_select %p187, %s186, 4
        %s189 = smul.u32 128, %s188
        %v190 = vld [vmem:[%s158] sm:$0xff]
        %v191 = vld [vmem:[%s158 + $0x8] sm:$0xff]
        %v192 = vld [vmem:[%s158 + $0x10] sm:$0xff]
        %v193 = vld [vmem:[%s158 + $0x18] sm:$0xff]
        %v194 = vrot.slane %v190, 4
        %v195 = vadd.f32 %v190, %v194
        %v196 = vrot.slane %v195, 2
        %v197 = vadd.f32 %v195, %v196
        %v198 = vrot.slane %v197, 1
        %v199 = vadd.f32 %v197, %v198
        %v200 = vrot.slane %v191, 4
        %v201 = vadd.f32 %v191, %v200
        %v202 = vrot.slane %v201, 2
        %v203 = vadd.f32 %v201, %v202
        %v204 = vrot.slane %v203, 1
        %v205 = vadd.f32 %v203, %v204
        %v206 = vrot.slane %v192, 4
        %v207 = vadd.f32 %v192, %v206
        %v208 = vrot.slane %v207, 2
        %v209 = vadd.f32 %v207, %v208
        %v210 = vrot.slane %v209, 1
        %v211 = vadd.f32 %v209, %v210
        %v212 = vrot.slane %v193, 4
        %v213 = vadd.f32 %v193, %v212
        %v214 = vrot.slane %v213, 2
        %v215 = vadd.f32 %v213, %v214
        %v216 = vrot.slane %v215, 1
        %v217 = vadd.f32 %v215, %v216
        %v218 = vrcp.pop 8.0
        %v219 = vmul.f32 %v199, %v218
        %v220 = vmul.f32 %v205, %v218
        %v221 = vmul.f32 %v211, %v218
        %v222 = vmul.f32 %v217, %v218
        %v223 = vrot.slane %v190, 4
        %v224 = vmax.f32 %v190, %v223
        %v225 = vrot.slane %v224, 2
        %v226 = vmax.f32 %v224, %v225
        %v227 = vrot.slane %v226, 1
        %v228 = vmax.f32 %v226, %v227
        %v229 = vrot.slane %v191, 4
        %v230 = vmax.f32 %v191, %v229
        %v231 = vrot.slane %v230, 2
        %v232 = vmax.f32 %v230, %v231
        %v233 = vrot.slane %v232, 1
        %v234 = vmax.f32 %v232, %v233
        %v235 = vrot.slane %v192, 4
        %v236 = vmax.f32 %v192, %v235
        %v237 = vrot.slane %v236, 2
        %v238 = vmax.f32 %v236, %v237
        %v239 = vrot.slane %v238, 1
        %v240 = vmax.f32 %v238, %v239
        %v241 = vrot.slane %v193, 4
        %v242 = vmax.f32 %v193, %v241
        %v243 = vrot.slane %v242, 2
        %v244 = vmax.f32 %v242, %v243
        %v245 = vrot.slane %v244, 1
        %v246 = vmax.f32 %v244, %v245
        %v247 = vlaneseq
        %v248 = vand.u32 %v247, 127
        %vm249 = vcmp.ne.s32.totalorder %v248, 0
        %vm250 = vcmp.ne.s32.totalorder %v248, 127
        %s251 = sld [smem:[#allocation2 + $0x1]]
        %v252 = vstv %s251
        %v253 = vmul.f32 %v252, %v219
        %v254 = vmul.f32 %v252, %v220
        %v255 = vmul.f32 %v252, %v221
        %v256 = vmul.f32 %v252, %v222
        %s257 = sld [smem:[#allocation2 + $0x4]]
        %v258 = vstv %s257
        %v259 = vmul.f32 %v258, %v228
        %v260 = vmul.f32 %v258, %v234
        %v261 = vmul.f32 %v258, %v240
        %v262 = vmul.f32 %v258, %v246
        %v263 = vadd.f32 %v253, %v259
        %v264 = vadd.f32 %v254, %v260
        %v265 = vadd.f32 %v255, %v261
        %v266 = vadd.f32 %v256, %v262
        %s267 = sld [smem:[#allocation2]]
        %vm272 = vcmask 1041409
        %v273 = vsel %vm272, %v220, %v219
        %vm274 = vcmask 1042434
        %v275 = vsel %vm274, %v221, %v273
        %vm276 = vcmask 1043459
        %v277 = vsel %vm276, %v222, %v275
        %279 = vrot.lane.b32.xlu0 %v277, 1
        %v280 = vpop.permute.xlu0 %279
        %v281 = vsel %vm249, %v280, 0.0
        %v282 = vstv %s267
        %v283 = vmul.f32 %v282, %v281
        %v285 = vrot.slane %v283, 1
        %v286 = vrot.slane %v283, 2
        %v287 = vrot.slane %v283, 3
        %v292 = vadd.f32 %v263, %v283
        %v293 = vadd.f32 %v264, %v285
        %v294 = vadd.f32 %v265, %v286
        %v295 = vadd.f32 %v266, %v287
        %s296 = sld [smem:[#allocation2 + $0x3]]
        %v301 = vsel %vm272, %v234, %v228
        %v302 = vsel %vm274, %v240, %v301
        %v303 = vsel %vm276, %v246, %v302
        %305 = vrot.lane.b32.xlu0 %v303, 1
        %v306 = vpop.permute.xlu0 %305
        %v307 = vsel %vm249, %v306, 0.0
        %v308 = vstv %s296
        %v309 = vmul.f32 %v308, %v307
        %v311 = vrot.slane %v309, 1
        %v312 = vrot.slane %v309, 2
        %v313 = vrot.slane %v309, 3
        %v318 = vadd.f32 %v292, %v309
        %v319 = vadd.f32 %v293, %v311
        %v320 = vadd.f32 %v294, %v312
        %v321 = vadd.f32 %v295, %v313
        %s322 = sld [smem:[#allocation2 + $0x2]]
        %323 = vrot.lane.b32.xlu0 %v277, 127
        %v324 = vpop.permute.xlu0 %323
        %v325 = vsel %vm250, %v324, 0.0
        %v326 = vstv %s322
        %v327 = vmul.f32 %v326, %v325
        %v329 = vrot.slane %v327, 1
        %v330 = vrot.slane %v327, 2
        %v331 = vrot.slane %v327, 3
        %v336 = vadd.f32 %v318, %v327
        %v337 = vadd.f32 %v319, %v329
        %v338 = vadd.f32 %v320, %v330
        %v339 = vadd.f32 %v321, %v331
        %s340 = sld [smem:[#allocation2 + $0x5]]
        %341 = vrot.lane.b32.xlu0 %v303, 127
        %v342 = vpop.permute.xlu0 %341
        %v343 = vsel %vm250, %v342, 0.0
        %v344 = vstv %s340
        %v345 = vmul.f32 %v344, %v343
        %v347 = vrot.slane %v345, 1
        %v348 = vrot.slane %v345, 2
        %v349 = vrot.slane %v345, 3
        %v354 = vadd.f32 %v336, %v345
        %v355 = vadd.f32 %v337, %v347
        %v356 = vadd.f32 %v338, %v348
        %v357 = vadd.f32 %v339, %v349
        %s358 = sld [smem:[#allocation2 + $0x6]]
        %v359 = vstv %s358
        %v360 = vadd.f32 %v354, %v359
        %v361 = vadd.f32 %v355, %v359
        %v362 = vadd.f32 %v356, %v359
        %v363 = vadd.f32 %v357, %v359
        %v364 = vxor.u32 %v360, 2147483648
        %v365 = vxor.u32 %v361, 2147483648
        %v366 = vxor.u32 %v362, 2147483648
        %v367 = vxor.u32 %v363, 2147483648
        %v368 = vmul.f32 %v364, 1.442695
        %v369 = vpow.pop %v368
        %v370 = vmul.f32 %v365, 1.442695
        %v371 = vpow.pop %v370
        %v372 = vmul.f32 %v366, 1.442695
        %v373 = vpow.pop %v372
        %v374 = vmul.f32 %v367, 1.442695
        %v375 = vpow.pop %v374
        %v376 = vadd.f32 %v369, 1.0
        %v377 = vadd.f32 %v371, 1.0
        %v378 = vadd.f32 %v373, 1.0
        %v379 = vadd.f32 %v375, 1.0
        %v380 = vrcp.pop %v376
        %v381 = vmul.f32 1.0, %v380
        %v382 = vrcp.pop %v377
        %v383 = vmul.f32 1.0, %v382
        %v384 = vrcp.pop %v378
        %v385 = vmul.f32 1.0, %v384
        %v386 = vrcp.pop %v379
        %v387 = vmul.f32 1.0, %v386
        %v388 = vlaneseq
        %v389 = vshrl.u32 %v388, 7
        %v390 = vsub.s32 0, %v389
        %v391 = vrot.slane %v381, %v390
        %v392 = vlaneseq
        %v393 = vshrl.u32 %v392, 7
        %v394 = vsub.s32 0, %v393
        %v395 = vrot.slane %v383, %v394
        %v396 = vlaneseq
        %v397 = vshrl.u32 %v396, 7
        %v398 = vsub.s32 0, %v397
        %v399 = vrot.slane %v385, %v398
        %v400 = vlaneseq
        %v401 = vshrl.u32 %v400, 7
        %v402 = vsub.s32 0, %v401
        %v403 = vrot.slane %v387, %v402
        %v404 = vmul.f32 %v190, %v391
        %v405 = vmul.f32 %v191, %v395
        %v406 = vmul.f32 %v192, %v399
        %v407 = vmul.f32 %v193, %v403
        %408 = vst [vmem:[%s179] sm:$0xff] %v404
        %409 = vst [vmem:[%s179 + $0x8] sm:$0xff] %v405
        %410 = vst [vmem:[%s179 + $0x10] sm:$0xff] %v406
        %411 = vst [vmem:[%s179 + $0x18] sm:$0xff] %v407
        %s412 = sand.u32 %s75, 1
        %s413 = scalar_lea.sflag [#allocation4], %s412
        %s414 = sand.u32 %s75, 1
        %s415 = smul.addr %s414, 32
        %s416 = scalar_lea.vmem [#allocation7], %s415
        // Predicated region
        $region37: #{spatial_attention_forward.1} parent=27 // pred_check
          %p417 = pneg %p85
        $region38: #{spatial_attention_forward.1} parent=27 // pred_check_branch
          %419 = sbr.rel (%p417) target = $region40
        $region39: #{spatial_attention_forward.1} parent=27 // pred_region
          %s420 = smul.u32 4, %s20
          %s421 = ssub.s32 7, %s420
          %p422 = scmp.lt.s32.totalorder %s421, 4
          %s423 = scalar_select %p422, %s421, 4
          %s424 = smul.u32 128, %s423
          %s426 = ssub.s32 512, %s424
          %427 = vsyncadd %s413, %s426
          %p428 = scmp.ne.s32.totalorder 0, %s424
          %s429 = smul.addr %s420, 128
          %s430 = scalar_lea.hbm %s2, %s429
          %s431 = smul.u32 8, %s423
          %s432 = sshll.u32 %s416, 4
          %s433 = int_to_ptr.vmem [resolvable:$true] %s432
          %s434 = sshll.u32 %s431, 4
          %438 = dma.vmem_to_hbm [thread:$0]  (%p428), %s433, %s434, %s430, %s413, 128, 128, 8
        $region40: #{spatial_attention_forward.1} parent=27 // pred_fallthru
          _
      $region28: #{spatial_attention_forward.1} parent=5 // pred_fallthru
        _
      %p439 = scmp.le.s32.totalorder 2, %s15
      // Predicated region
      $region41: #{spatial_attention_forward.1} parent=5 // pred_check
        %p440 = pneg %p439
      $region42: #{spatial_attention_forward.1} parent=5 // pred_check_branch
        %442 = sbr.rel (%p440) target = $region44
      $region43: #{spatial_attention_forward.1} parent=5 // pred_region
        %s443 = ssub.s32 %s15, 2
        // Predicated region
        $region45: #{spatial_attention_forward.1} parent=43 // pred_check
          %p444 = pneg %p91
        $region46: #{spatial_attention_forward.1} parent=43 // pred_check_branch
          %446 = sbr.rel (%p444) target = $region48
        $region47: #{spatial_attention_forward.1} parent=43 // pred_region
          %s447 = sand.u32 %s76, 1
          %s448 = scalar_lea.sflag [#allocation4], %s447
          %s449 = sand.u32 %s76, 1
          %s450 = smul.addr %s449, 32
          %s451 = scalar_lea.vmem [#allocation7], %s450
          %452 = dma.done %s448, 512
        $region48: #{spatial_attention_forward.1} parent=43 // pred_fallthru
          _
      $region44: #{spatial_attention_forward.1} parent=5 // pred_fallthru
        _
    $region6: #{spatial_attention_forward.1} parent=1 // loop_footer
      %s19 = sadd.s32 1, %s15
    $region7: #{spatial_attention_forward.1} parent=1 // loop_footer_branch
      %14 = sbr.rel target = $region3
    $region8: #{spatial_attention_forward.1} parent=1 // loop_exit
      _
    %453 = vsyncpa [#allocation3], 1
    %s454 = scalar_lea.sflag [#allocation3], 1
    %455 = vsyncpa %s454, 1
    %456 = vsyncpa [#allocation4], 1
    %s457 = scalar_lea.sflag [#allocation4], 1
    %458 = vsyncpa %s457, 1
    %459 = vsyncpa [#allocation5], 1
    %s460 = scalar_lea.sflag [#allocation5], 1
    %461 = vsyncpa %s460, 1

</llo_original>
